<compile_context>
chip_gen: v5e
topology: v5e:2x2
jax: 0.10.0
libtpu: 0.0.40
codegen_flags: <defaults>
</compile_context>

<pallas_src>
import jax
import jax.numpy as jnp
from jax.experimental import pallas as pl
from jax.experimental.pallas import tpu as pltpu


def _linreg_kernel(w_ref, b_ref, x_ref, o_ref):
    # w_ref / b_ref are (1, 1) f32 scalars in SMEM; x_ref / o_ref are VMEM tiles.
    w = w_ref[0, 0]
    b = b_ref[0, 0]
    y = w * x_ref[...].astype(jnp.float32) + b
    o_ref[...] = y.astype(o_ref.dtype)


def _round_up(v: int, m: int) -> int:
    return ((v + m - 1) // m) * m


def linear_regression_forward(
    x: jax.Array,
    weights: jax.Array,
    bias: jax.Array,
    *,
    target_block_bytes: int = 8 * 1024 * 1024,   # ~8 MiB blocks (good for v7x, fine v5e/v6e)
    small_slab_bytes: int = 512 * 1024,          # below this: single full-extent block
    min_grid_steps: int = 4,                     # keep the pipeline double-buffered
    vmem_limit_bytes: int = 48 * 1024 * 1024,    # 2 in + 2 out 8 MiB bufs + headroom
) -> jax.Array:
    """y = weights * x + bias for arbitrary-shaped x (scalar weights/bias)."""
    if weights.size != 1 or bias.size != 1:
        raise ValueError("weights and bias must each have exactly one element")

    orig_shape = x.shape
    out_dtype = x.dtype
    n = int(x.size)
    if n == 0:
        return jnp.zeros(orig_shape, out_dtype)

    elem_bytes = jnp.dtype(out_dtype).itemsize

    # ---- layout plumbing: lane-dense [rows, lanes] slab, zero-copy when possible
    lanes = None
    for cand in (512, 256, 128):
        if n % cand == 0:
            lanes = cand
            break

    if lanes is not None:
        # Free reshape of a contiguous array: no pad, no trim needed afterwards.
        x2 = x.reshape(n // lanes, lanes)
        trim = None
    else:
        # Ragged size: a single flat pad (one extra HBM pass) + one trim at the end.
        lanes = 128
        n_pad = pl.cdiv(n, lanes) * lanes
        x2 = jnp.pad(x.reshape(-1), (0, n_pad - n)).reshape(n_pad // lanes, lanes)
        trim = n

    rows = x2.shape[0]
    slab_bytes = rows * lanes * elem_bytes

    # ---- tile selection
    if slab_bytes <= small_slab_bytes or rows <= 8:
        # Tiny slab: single full-extent block (block dims == array dims, so no
        # (8,128) divisibility requirement).
        tile_rows = rows
    else:
        max_block_rows = max(8, (target_block_bytes // (lanes * elem_bytes)) // 8 * 8)
        want_rows = _round_up(pl.cdiv(rows, min_grid_steps), 8)
        tile_rows = int(min(max_block_rows, max(8, want_rows)))

    # No rows-padding pass: a partial last block is handled by Pallas edge-block
    # semantics (OOB reads padded, OOB writes dropped).
    grid = (pl.cdiv(rows, tile_rows),)

    # Scalars live in SMEM as (1, 1) so the kernel reads them cheaply.
    w2 = weights.reshape(1, 1).astype(jnp.float32)
    b2 = bias.reshape(1, 1).astype(jnp.float32)

    y2 = pl.pallas_call(
        _linreg_kernel,
        out_shape=jax.ShapeDtypeStruct((rows, lanes), out_dtype),
        grid_spec=pl.GridSpec(
            grid=grid,
            in_specs=[
                pl.BlockSpec(memory_space=pltpu.MemorySpace.SMEM),   # weights
                pl.BlockSpec(memory_space=pltpu.MemorySpace.SMEM),   # bias
                pl.BlockSpec((tile_rows, lanes), lambda i: (i, 0)),  # x tile
            ],
            out_specs=pl.BlockSpec((tile_rows, lanes), lambda i: (i, 0)),
        ),
        compiler_params=pltpu.CompilerParams(
            dimension_semantics=("parallel",),       # shards row-blocks across TCs on v7x
            vmem_limit_bytes=vmem_limit_bytes,
        ),
    )(w2, b2, x2)

    if trim is None:
        return y2.reshape(orig_shape)
    return y2.reshape(-1)[:trim].reshape(orig_shape)


if __name__ == "__main__":
    key = jax.random.PRNGKey(0)
    kx, kx2, kx3, kw, kb = jax.random.split(key, 5)

    # Deterministic parameter init (mirrors nn.Parameter(torch.randn(1)))
    weights = jax.random.normal(kw, (1,), dtype=jnp.float32)
    bias = jax.random.normal(kb, (1,), dtype=jnp.float32)

    # 1) Zero-copy fast path: 2*4*16*16 = 2048 elements (multiple of 512),
    #    single full-extent block, no pad / no trim.
    x = jax.random.normal(kx, (2, 4, 16, 16), dtype=jnp.float32)
    y = jax.block_until_ready(linear_regression_forward(x, weights, bias))
    y_ref = weights[0] * x + bias[0]
    assert y.shape == x.shape
    assert jnp.allclose(y, y_ref, atol=1e-6, rtol=1e-6)

    # 2) Ragged size: exercises the single-pad + trim fallback path.
    x_odd = jax.random.normal(kx2, (3, 7, 5), dtype=jnp.float32)
    y_odd = jax.block_until_ready(linear_regression_forward(x_odd, weights, bias))
    y_odd_ref = weights[0] * x_odd + bias[0]
    assert y_odd.shape == x_odd.shape
    assert jnp.allclose(y_odd, y_odd_ref, atol=1e-6, rtol=1e-6)

    # 3) Multi-step grid with an overhanging edge block:
    #    rows=600, tile_rows=152, grid=(4,) -> last block relies on OOB-write drop.
    x_mid = jax.random.normal(kx3, (2, 300, 512), dtype=jnp.float32)
    y_mid = jax.block_until_ready(linear_regression_forward(x_mid, weights, bias))
    y_mid_ref = weights[0] * x_mid + bias[0]
    assert y_mid.shape == x_mid.shape
    assert jnp.allclose(y_mid, y_mid_ref, atol=1e-6, rtol=1e-6)

    print("KERNEL_OK")
</pallas_src>

<mosaic_0001>
module attributes {stable_mosaic.version = 11 : i64} {
  func.func @_linreg_kernel(%arg0: i32, %arg1: memref<1x1xf32, #tpu.memory_space<smem>>, %arg2: memref<1x1xf32, #tpu.memory_space<smem>>, %arg3: memref<4x512xf32, #tpu.memory_space<vmem>>, %arg4: memref<4x512xf32, #tpu.memory_space<vmem>>) attributes {dimension_semantics = [#tpu.dimension_semantics<parallel>], iteration_bounds = array<i64: 1>, scalar_prefetch = 0 : i64, scratch_operands = 0 : i64, tpu.core_type = #tpu.core_type<tc>, window_params = [{transform_indices = @transform_0, window_bounds = array<i64: 1, 1>}, {transform_indices = @transform_1, window_bounds = array<i64: 1, 1>}, {transform_indices = @transform_2, window_bounds = array<i64: 4, 512>}, {transform_indices = @transform_3, window_bounds = array<i64: 4, 512>}]} {
    %c0 = arith.constant 0 : index
    %c0_0 = arith.constant 0 : index
    %0 = memref.load %arg1[%c0, %c0_0] : memref<1x1xf32, #tpu.memory_space<smem>>
    %c0_1 = arith.constant 0 : index
    %c0_2 = arith.constant 0 : index
    %1 = memref.load %arg2[%c0_1, %c0_2] : memref<1x1xf32, #tpu.memory_space<smem>>
    %c0_3 = arith.constant 0 : index
    %c0_4 = arith.constant 0 : index
    %2 = vector.load %arg3[%c0_3, %c0_4] : memref<4x512xf32, #tpu.memory_space<vmem>>, vector<4x512xf32>
    %3 = vector.broadcast %0 : f32 to vector<4x512xf32>
    %4 = arith.mulf %3, %2 : vector<4x512xf32>
    %5 = vector.broadcast %1 : f32 to vector<4x512xf32>
    %6 = arith.addf %4, %5 : vector<4x512xf32>
    %c0_5 = arith.constant 0 : index
    %c0_6 = arith.constant 0 : index
    %7 = vector.load %arg4[%c0_5, %c0_6] : memref<4x512xf32, #tpu.memory_space<vmem>>, vector<4x512xf32>
    tpu.vector_store %arg4[%c0_5, %c0_6], %6 {strides = array<i32>} : memref<4x512xf32, #tpu.memory_space<vmem>>, vector<4x512xf32>,
    return
  }
  func.func @transform_0(%arg0: i32) -> (i32, i32) {
    %c0_i32 = arith.constant 0 : i32
    %c0_i32_0 = arith.constant 0 : i32
    %c0_i32_1 = arith.constant 0 : i32
    return %c0_i32, %c0_i32_0 : i32, i32
  }
  func.func @transform_1(%arg0: i32) -> (i32, i32) {
    %c0_i32 = arith.constant 0 : i32
    %c0_i32_0 = arith.constant 0 : i32
    %c0_i32_1 = arith.constant 0 : i32
    return %c0_i32, %c0_i32_0 : i32, i32
  }
  func.func @transform_2(%arg0: i32) -> (i32, i32) {
    %c0_i32 = arith.constant 0 : i32
    %c0_i32_0 = arith.constant 0 : i32
    return %arg0, %c0_i32 : i32, i32
  }
  func.func @transform_3(%arg0: i32) -> (i32, i32) {
    %c0_i32 = arith.constant 0 : i32
    %c0_i32_0 = arith.constant 0 : i32
    return %arg0, %c0_i32 : i32, i32
  }
}

</mosaic_0001>

<llo_original>
// kernel: tpu_custom_call.1
$region0: #{tpu_custom_call.1}
  #allocation0 [shape = 'u32[]', space=smem, size = 0x4, offset = 0x4, fixed_abs, tag = 'smem constant byte address 0x4 - core index']
  #allocation1 [shape = 'u32[72,128]{1,0:T(1,128)}', space=vmem, size = 0x9000, scoped, tag = 'internal scratch']
  #allocation2 [shape = 'f32[1,1]{1,0:T(1,128)S(6)}', space=smem, size = 0x200, scoped, tag = 'scoped memory for tpu_custom_call.1']
  #allocation3 [shape = 'f32[1,1]{1,0:T(1,128)S(6)}', space=smem, size = 0x200, scoped, tag = 'scoped memory for tpu_custom_call.1']
  %s0 = inlined_call_operand.<no memory space> [shape: f32[1,1], index: 0, kind: input, shape index: {}]
  %s1 = inlined_call_operand.<no memory space> [shape: f32[1,1], index: 1, kind: input, shape index: {}]
  %s2 = inlined_call_operand.hbm [shape: f32[4,512], index: 2, kind: input, shape index: {}]
  %s3 = inlined_call_operand.hbm [shape: f32[4,512], index: 3, kind: output, shape index: {}]
  %s4 = sld [smem:[#allocation0]]
  $region26: #{tpu_custom_call.1} parent=0
    _
  %s6 = ssub.s32 1, %s4
  %s7 = scalar_select 0, %s6, %s4
  %8 = sst [smem:[#allocation2]] %s0
  %9 = sst [smem:[#allocation3]] %s1
  $region1: #{tpu_custom_call.1} parent=0
    #allocation4 [shape = 'u8[8192]{0}', space=vmem, size = 0x2000, scoped, tag = 'input window, operand 2, single buffered']
    #allocation5 [shape = 's32[1]{0}', space=sflag, size = 0x4, scoped, tag = 'scoped memory for tpu_custom_call.1']
    #allocation6 [shape = 's32[1]{0}', space=sflag, size = 0x4, scoped, tag = 'scoped memory for tpu_custom_call.1']
    #allocation7 [shape = 'u8[8192]{0}', space=vmem, size = 0x2000, scoped, tag = 'output window, operand 0, single buffered']
    %10 = vsyncpa [#allocation5], 0
    %11 = vsyncpa [#allocation6], 0
    // Predicated region
    $region2: #{tpu_custom_call.1} parent=1 // pred_check
      _
    $region3: #{tpu_custom_call.1} parent=1 // pred_check_branch
      %13 = sbr.rel (0) target = $region5
    $region4: #{tpu_custom_call.1} parent=1 // pred_region
      _
    $region5: #{tpu_custom_call.1} parent=1 // pred_fallthru
      _
    // Predicated region
    $region6: #{tpu_custom_call.1} parent=1 // pred_check
      _
    $region7: #{tpu_custom_call.1} parent=1 // pred_check_branch
      %15 = sbr.rel (0) target = $region9
    $region8: #{tpu_custom_call.1} parent=1 // pred_region
      _
    $region9: #{tpu_custom_call.1} parent=1 // pred_fallthru
      _
    // Predicated region
    $region10: #{tpu_custom_call.1} parent=1 // pred_check
      _
    $region11: #{tpu_custom_call.1} parent=1 // pred_check_branch
      %17 = sbr.rel (0) target = $region13
    $region12: #{tpu_custom_call.1} parent=1 // pred_region
      %19 = vsyncadd [#allocation5], 0
      %s21 = sshll.u32 %s2, 4
      %s22 = int_to_ptr.hbm [resolvable:$true] %s21
      %s23 = sshll.u32 [#allocation4], 4
      %s24 = int_to_ptr.vmem [resolvable:$true] %s23
      %26 = dma.hbm_to_vmem [thread:$0]  %s22, 256, %s24, [#allocation5]
    $region13: #{tpu_custom_call.1} parent=1 // pred_fallthru
      _
    // Predicated region
    $region14: #{tpu_custom_call.1} parent=1 // pred_check
      _
    $region15: #{tpu_custom_call.1} parent=1 // pred_check_branch
      %28 = sbr.rel (0) target = $region17
    $region16: #{tpu_custom_call.1} parent=1 // pred_region
      %30 = dma.done [#allocation5], 256
    $region17: #{tpu_custom_call.1} parent=1 // pred_fallthru
      _
    %s31 = sld [smem:[#allocation2]]
    %s32 = sld [smem:[#allocation3]]
    %v33 = vld [vmem:[#allocation4] sm:$0xff]
    %v34 = vld [vmem:[#allocation4 + $0x8] sm:$0xff]
    %v35 = vstv %s31
    %v36 = vmul.f32 %v35, %v33
    %v37 = vmul.f32 %v35, %v34
    %v38 = vstv %s32
    %v39 = vadd.f32 %v36, %v38
    %v40 = vadd.f32 %v37, %v38
    %41 = vst [vmem:[#allocation7] sm:$0xff] %v39
    %42 = vst [vmem:[#allocation7 + $0x8] sm:$0xff] %v40
    // Predicated region
    $region18: #{tpu_custom_call.1} parent=1 // pred_check
      _
    $region19: #{tpu_custom_call.1} parent=1 // pred_check_branch
      %44 = sbr.rel (0) target = $region21
    $region20: #{tpu_custom_call.1} parent=1 // pred_region
      %46 = vsyncadd [#allocation6], 0
      %s48 = sshll.u32 [#allocation7], 4
      %s49 = int_to_ptr.vmem [resolvable:$true] %s48
      %s50 = sshll.u32 %s3, 4
      %s51 = int_to_ptr.hbm [resolvable:$true] %s50
      %53 = dma.vmem_to_hbm [thread:$0]  %s49, 256, %s51, [#allocation6]
    $region21: #{tpu_custom_call.1} parent=1 // pred_fallthru
      _
    // Predicated region
    $region22: #{tpu_custom_call.1} parent=1 // pred_check
      _
    $region23: #{tpu_custom_call.1} parent=1 // pred_check_branch
      %55 = sbr.rel (0) target = $region25
    $region24: #{tpu_custom_call.1} parent=1 // pred_region
      %57 = dma.done [#allocation6], 256
    $region25: #{tpu_custom_call.1} parent=1 // pred_fallthru
      _
    %58 = vsyncpa [#allocation5], 1
    %59 = vsyncpa [#allocation6], 1

</llo_original>
